<compile_context>
chip_gen: v7x
topology: tpu7x:2x2x1
jax: 0.10.0
libtpu: 0.0.40
codegen_flags: <defaults>
</compile_context>

<pallas_src>
import functools

import jax
import jax.numpy as jnp
from jax.experimental import pallas as pl
from jax.experimental.pallas import tpu as pltpu

EPS = 1e-5  # torch.nn.LayerNorm default


def _round_up(a, b):
    return (a + b - 1) // b * b


def _cdiv(a, b):
    return (a + b - 1) // b


def _sublane_multiple(*dtypes):
    # 4-byte dtypes pack 8 rows per sublane tile, 2-byte -> 16, 1-byte -> 32.
    return max(32 // jnp.dtype(d).itemsize for d in dtypes)


def _vmem_capacity_bytes():
    try:
        return int(pltpu.get_tpu_info().vmem_capacity_bytes)
    except Exception:
        return 128 * 1024 * 1024  # v5e / v6e default if the query is unavailable


def _layernorm(v):
    """LayerNorm (no affine) over the last axis; statistics computed in f32."""
    v32 = v.astype(jnp.float32)
    mu = jnp.mean(v32, axis=-1, keepdims=True)
    diff = v32 - mu
    var = jnp.mean(diff * diff, axis=-1, keepdims=True)
    return diff * jax.lax.rsqrt(var + EPS)


def prenorm_kernel(x_ref, c_ref, w_ref, wc_ref, b_ref, o_ref, *, mxu_dtype):
    # x_ref: (TM, D), c_ref: (TM, Dc), w_ref: (D, D), wc_ref: (Dc, D), b_ref: (1, D)
    xn = _layernorm(x_ref[...]).astype(mxu_dtype)
    cn = _layernorm(c_ref[...]).astype(mxu_dtype)
    # Two MXU contractions accumulated in f32 (no concat -> no extra VMEM copy).
    acc = jnp.dot(xn, w_ref[...], preferred_element_type=jnp.float32)
    acc = acc + jnp.dot(cn, wc_ref[...], preferred_element_type=jnp.float32)
    o_ref[...] = (acc + b_ref[...]).astype(o_ref.dtype)


def prenorm_forward(x, context, params, *, mxu_dtype=jnp.bfloat16):
    B, N, D = x.shape
    Bc, Nc, Dc = context.shape
    assert (B, N) == (Bc, Nc)
    gamma, beta, gamma_c, beta_c, W, Wc, bias = params

    # ---- fold LayerNorm affine + fn bias into the projection (exact, one-time, tiny) ----
    W32, Wc32 = W.astype(jnp.float32), Wc.astype(jnp.float32)
    W_eff = (gamma.astype(jnp.float32)[:, None] * W32).astype(mxu_dtype)        # (D, D)
    Wc_eff = (gamma_c.astype(jnp.float32)[:, None] * Wc32).astype(mxu_dtype)    # (Dc, D)
    bias_eff = (beta.astype(jnp.float32) @ W32
                + beta_c.astype(jnp.float32) @ Wc32
                + bias.astype(jnp.float32)).reshape(1, D)                       # (1, D) f32

    rows = B * N
    x2 = x.reshape(rows, D)            # free metadata reshape, no HBM copy
    c2 = context.reshape(rows, Dc)
    out_dtype = x.dtype

    x_item = jnp.dtype(x.dtype).itemsize
    c_item = jnp.dtype(context.dtype).itemsize
    o_item = jnp.dtype(out_dtype).itemsize
    w_item = jnp.dtype(mxu_dtype).itemsize

    sub = _sublane_multiple(x.dtype, context.dtype, out_dtype)

    # ---- generation-aware VMEM budgeting ----
    cap = _vmem_capacity_bytes()                       # 64 MiB on v7x, 128 MiB on v5e/v6e
    ceiling = (cap * 3) // 4                           # headroom for compiler scratch
    # resident weights/bias are still double-buffered by the auto-pipeline
    w_bytes = 2 * ((D * D + Dc * D) * w_item + D * 4)
    per_row_bytes = 2 * (D * x_item + Dc * c_item + D * o_item)    # double-buffered tiles
    tile_budget = min(24 << 20 if cap <= (64 << 20) else 48 << 20,
                      max(ceiling - w_bytes, 2 * sub * per_row_bytes))

    tm = max(sub, (tile_budget // per_row_bytes) // sub * sub)
    tm = min(tm, 4096)
    # keep the grid at >= ~8 steps when rows allow (2 TCs on v7x + DMA pipeline depth)
    tm = min(tm, max(sub, _round_up(_cdiv(rows, 8), sub)))

    grid = (_cdiv(rows, tm),)    # ragged last block: OOB rows are per-row garbage in,
                                 # dropped on store -> no wrapper pad/slice HBM passes

    needed = w_bytes + tm * per_row_bytes
    vmem_limit = int(min(ceiling, max(16 << 20, 2 * needed)))
    vmem_limit = max(vmem_limit, needed + (2 << 20))

    kernel = functools.partial(prenorm_kernel, mxu_dtype=mxu_dtype)

    out = pl.pallas_call(
        kernel,
        out_shape=jax.ShapeDtypeStruct((rows, D), out_dtype),
        grid=grid,
        in_specs=[
            pl.BlockSpec((tm, D), lambda i: (i, 0)),    # x row tile (true feature width)
            pl.BlockSpec((tm, Dc), lambda i: (i, 0)),   # context row tile
            pl.BlockSpec((D, D), lambda i: (0, 0)),     # folded W   (resident)
            pl.BlockSpec((Dc, D), lambda i: (0, 0)),    # folded Wc  (resident)
            pl.BlockSpec((1, D), lambda i: (0, 0)),     # folded bias
        ],
        out_specs=pl.BlockSpec((tm, D), lambda i: (i, 0)),
        compiler_params=pltpu.CompilerParams(
            dimension_semantics=("parallel",),
            vmem_limit_bytes=vmem_limit),
    )(x2, c2, W_eff, Wc_eff, bias_eff)

    return out.reshape(B, N, D)


def prenorm_reference(x, context, params):
    gamma, beta, gamma_c, beta_c, W, Wc, bias = params

    def ln(v, g, b):
        mu = jnp.mean(v, axis=-1, keepdims=True)
        var = jnp.mean((v - mu) ** 2, axis=-1, keepdims=True)
        return (v - mu) / jnp.sqrt(var + EPS) * g + b

    xn = ln(x, gamma, beta)
    cn = ln(context, gamma_c, beta_c)
    return (jnp.einsum("bnd,de->bne", xn, W)
            + jnp.einsum("bnc,ce->bne", cn, Wc) + bias)


def _make_params(key, D, Dc):
    kg, kb, kgc, kbc, kw, kwc, kbias = jax.random.split(key, 7)
    gamma = 1.0 + 0.1 * jax.random.normal(kg, (D,), dtype=jnp.float32)
    beta = 0.1 * jax.random.normal(kb, (D,), dtype=jnp.float32)
    gamma_c = 1.0 + 0.1 * jax.random.normal(kgc, (Dc,), dtype=jnp.float32)
    beta_c = 0.1 * jax.random.normal(kbc, (Dc,), dtype=jnp.float32)
    W = 0.05 * jax.random.normal(kw, (D, D), dtype=jnp.float32)
    Wc = 0.05 * jax.random.normal(kwc, (Dc, D), dtype=jnp.float32)
    bias = 0.05 * jax.random.normal(kbias, (D,), dtype=jnp.float32)
    return (gamma, beta, gamma_c, beta_c, W, Wc, bias)


if __name__ == "__main__":
    key = jax.random.PRNGKey(0)
    kx, kc, kp, kx2, kc2 = jax.random.split(key, 5)

    # ---- small shape consistent with the module: B=2, N=8, dim=32, context_dim=16 ----
    B, N, D, Dc = 2, 8, 32, 16
    x = jax.random.normal(kx, (B, N, D), dtype=jnp.float32)
    context = jax.random.normal(kc, (B, N, Dc), dtype=jnp.float32)
    params = _make_params(kp, D, Dc)
    ref = prenorm_reference(x, context, params)

    # exact-precision path (f32 MXU operands)
    out_f32 = jax.block_until_ready(
        prenorm_forward(x, context, params, mxu_dtype=jnp.float32))
    assert out_f32.shape == (B, N, D)
    assert jnp.allclose(out_f32, ref, atol=1e-2, rtol=1e-2), "f32 path mismatch vs reference"

    # default fast path (bf16 MXU operands, f32 accumulation)
    out_bf16 = jax.block_until_ready(prenorm_forward(x, context, params))
    assert out_bf16.shape == (B, N, D)
    assert jnp.allclose(out_bf16, ref, atol=5e-2, rtol=5e-2), "bf16 path mismatch vs reference"

    # ---- ragged-rows case (rows not a multiple of the row tile) exercises the cdiv grid ----
    B2, N2 = 2, 10   # rows = 20, tm = 8 -> 3 grid steps, last block partially OOB
    x_r = jax.random.normal(kx2, (B2, N2, D), dtype=jnp.float32)
    c_r = jax.random.normal(kc2, (B2, N2, Dc), dtype=jnp.float32)
    ref_r = prenorm_reference(x_r, c_r, params)
    out_r = jax.block_until_ready(
        prenorm_forward(x_r, c_r, params, mxu_dtype=jnp.float32))
    assert out_r.shape == (B2, N2, D)
    assert jnp.allclose(out_r, ref_r, atol=1e-2, rtol=1e-2), "ragged-row path mismatch"

    print("KERNEL_OK")
</pallas_src>

<mosaic_0001>
module attributes {stable_mosaic.version = 11 : i64} {
  func.func @prenorm_kernel(%arg0: i32, %arg1: memref<8x32xf32, #tpu.memory_space<vmem>>, %arg2: memref<8x16xf32, #tpu.memory_space<vmem>>, %arg3: memref<32x32xf32, #tpu.memory_space<vmem>>, %arg4: memref<16x32xf32, #tpu.memory_space<vmem>>, %arg5: memref<1x32xf32, #tpu.memory_space<vmem>>, %arg6: memref<8x32xf32, #tpu.memory_space<vmem>>) attributes {dimension_semantics = [#tpu.dimension_semantics<parallel>], iteration_bounds = array<i64: 2>, scalar_prefetch = 0 : i64, scratch_operands = 0 : i64, tpu.core_type = #tpu.core_type<tc>, window_params = [{transform_indices = @transform_0, window_bounds = array<i64: 8, 32>}, {transform_indices = @transform_1, window_bounds = array<i64: 8, 16>}, {pipeline_mode = #tpu.pipeline_mode<synchronous>, transform_indices = @transform_2, window_bounds = array<i64: 32, 32>}, {pipeline_mode = #tpu.pipeline_mode<synchronous>, transform_indices = @transform_3, window_bounds = array<i64: 16, 32>}, {pipeline_mode = #tpu.pipeline_mode<synchronous>, transform_indices = @transform_4, window_bounds = array<i64: 1, 32>}, {transform_indices = @transform_5, window_bounds = array<i64: 8, 32>}]} {
    %c0 = arith.constant 0 : index
    %c0_0 = arith.constant 0 : index
    %0 = vector.load %arg1[%c0, %c0_0] : memref<8x32xf32, #tpu.memory_space<vmem>>, vector<8x32xf32>
    %cst = arith.constant dense<0.000000e+00> : vector<8xf32>
    %1 = vector.multi_reduction <add>, %0, %cst [1] : vector<8x32xf32> to vector<8xf32>
    %2 = vector.shape_cast %1 : vector<8xf32> to vector<8x1xf32>
    %cst_1 = arith.constant 3.200000e+01 : f32
    %3 = vector.broadcast %cst_1 : f32 to vector<8x1xf32>
    %4 = arith.divf %2, %3 : vector<8x1xf32>
    %5 = vector.broadcast %4 : vector<8x1xf32> to vector<8x32xf32>
    %6 = arith.subf %0, %5 : vector<8x32xf32>
    %7 = arith.mulf %6, %6 : vector<8x32xf32>
    %cst_2 = arith.constant dense<0.000000e+00> : vector<8xf32>
    %8 = vector.multi_reduction <add>, %7, %cst_2 [1] : vector<8x32xf32> to vector<8xf32>
    %9 = vector.shape_cast %8 : vector<8xf32> to vector<8x1xf32>
    %cst_3 = arith.constant 3.200000e+01 : f32
    %10 = vector.broadcast %cst_3 : f32 to vector<8x1xf32>
    %11 = arith.divf %9, %10 : vector<8x1xf32>
    %cst_4 = arith.constant 9.99999974E-6 : f32
    %12 = vector.broadcast %cst_4 : f32 to vector<8x1xf32>
    %13 = arith.addf %11, %12 : vector<8x1xf32>
    %14 = math.rsqrt %13 : vector<8x1xf32>
    %15 = vector.broadcast %14 : vector<8x1xf32> to vector<8x32xf32>
    %16 = arith.mulf %6, %15 : vector<8x32xf32>
    %c0_5 = arith.constant 0 : index
    %c0_6 = arith.constant 0 : index
    %17 = vector.load %arg2[%c0_5, %c0_6] : memref<8x16xf32, #tpu.memory_space<vmem>>, vector<8x16xf32>
    %cst_7 = arith.constant dense<0.000000e+00> : vector<8xf32>
    %18 = vector.multi_reduction <add>, %17, %cst_7 [1] : vector<8x16xf32> to vector<8xf32>
    %19 = vector.shape_cast %18 : vector<8xf32> to vector<8x1xf32>
    %cst_8 = arith.constant 1.600000e+01 : f32
    %20 = vector.broadcast %cst_8 : f32 to vector<8x1xf32>
    %21 = arith.divf %19, %20 : vector<8x1xf32>
    %22 = vector.broadcast %21 : vector<8x1xf32> to vector<8x16xf32>
    %23 = arith.subf %17, %22 : vector<8x16xf32>
    %24 = arith.mulf %23, %23 : vector<8x16xf32>
    %cst_9 = arith.constant dense<0.000000e+00> : vector<8xf32>
    %25 = vector.multi_reduction <add>, %24, %cst_9 [1] : vector<8x16xf32> to vector<8xf32>
    %26 = vector.shape_cast %25 : vector<8xf32> to vector<8x1xf32>
    %cst_10 = arith.constant 1.600000e+01 : f32
    %27 = vector.broadcast %cst_10 : f32 to vector<8x1xf32>
    %28 = arith.divf %26, %27 : vector<8x1xf32>
    %cst_11 = arith.constant 9.99999974E-6 : f32
    %29 = vector.broadcast %cst_11 : f32 to vector<8x1xf32>
    %30 = arith.addf %28, %29 : vector<8x1xf32>
    %31 = math.rsqrt %30 : vector<8x1xf32>
    %32 = vector.broadcast %31 : vector<8x1xf32> to vector<8x16xf32>
    %33 = arith.mulf %23, %32 : vector<8x16xf32>
    %c0_12 = arith.constant 0 : index
    %c0_13 = arith.constant 0 : index
    %34 = vector.load %arg3[%c0_12, %c0_13] : memref<32x32xf32, #tpu.memory_space<vmem>>, vector<32x32xf32>
    %cst_14 = arith.constant dense<0.000000e+00> : vector<8x32xf32>
    %35 = tpu.matmul %16, %34, %cst_14 {dimension_numbers = #tpu.dot_dimension_numbers<[1], [0], [0], [1], [0, 0, 1, 1], [], []>} : vector<8x32xf32>, vector<32x32xf32>, vector<8x32xf32> -> vector<8x32xf32>
    %c0_15 = arith.constant 0 : index
    %c0_16 = arith.constant 0 : index
    %36 = vector.load %arg4[%c0_15, %c0_16] : memref<16x32xf32, #tpu.memory_space<vmem>>, vector<16x32xf32>
    %cst_17 = arith.constant dense<0.000000e+00> : vector<8x32xf32>
    %37 = tpu.matmul %33, %36, %cst_17 {dimension_numbers = #tpu.dot_dimension_numbers<[1], [0], [0], [1], [0, 0, 1, 1], [], []>} : vector<8x16xf32>, vector<16x32xf32>, vector<8x32xf32> -> vector<8x32xf32>
    %38 = arith.addf %35, %37 : vector<8x32xf32>
    %c0_18 = arith.constant 0 : index
    %c0_19 = arith.constant 0 : index
    %39 = vector.load %arg5[%c0_18, %c0_19] : memref<1x32xf32, #tpu.memory_space<vmem>>, vector<1x32xf32>
    %40 = vector.broadcast %39 : vector<1x32xf32> to vector<8x32xf32>
    %41 = arith.addf %38, %40 : vector<8x32xf32>
    %c0_20 = arith.constant 0 : index
    %c0_21 = arith.constant 0 : index
    %42 = vector.load %arg6[%c0_20, %c0_21] : memref<8x32xf32, #tpu.memory_space<vmem>>, vector<8x32xf32>
    tpu.vector_store %arg6[%c0_20, %c0_21], %41 {strides = array<i32>} : memref<8x32xf32, #tpu.memory_space<vmem>>, vector<8x32xf32>,
    return
  }
  func.func @transform_0(%arg0: i32) -> (i32, i32) {
    %c0_i32 = arith.constant 0 : i32
    %c0_i32_0 = arith.constant 0 : i32
    return %arg0, %c0_i32 : i32, i32
  }
  func.func @transform_1(%arg0: i32) -> (i32, i32) {
    %c0_i32 = arith.constant 0 : i32
    %c0_i32_0 = arith.constant 0 : i32
    return %arg0, %c0_i32 : i32, i32
  }
  func.func @transform_2(%arg0: i32) -> (i32, i32) {
    %c0_i32 = arith.constant 0 : i32
    %c0_i32_0 = arith.constant 0 : i32
    %c0_i32_1 = arith.constant 0 : i32
    return %c0_i32, %c0_i32_0 : i32, i32
  }
  func.func @transform_3(%arg0: i32) -> (i32, i32) {
    %c0_i32 = arith.constant 0 : i32
    %c0_i32_0 = arith.constant 0 : i32
    %c0_i32_1 = arith.constant 0 : i32
    return %c0_i32, %c0_i32_0 : i32, i32
  }
  func.func @transform_4(%arg0: i32) -> (i32, i32) {
    %c0_i32 = arith.constant 0 : i32
    %c0_i32_0 = arith.constant 0 : i32
    %c0_i32_1 = arith.constant 0 : i32
    return %c0_i32, %c0_i32_0 : i32, i32
  }
  func.func @transform_5(%arg0: i32) -> (i32, i32) {
    %c0_i32 = arith.constant 0 : i32
    %c0_i32_0 = arith.constant 0 : i32
    return %arg0, %c0_i32 : i32, i32
  }
}

</mosaic_0001>

<llo_original>
// kernel: tpu_custom_call.1
$region0: #{tpu_custom_call.1}
  #allocation0 [shape = 'u32[]', space=smem, size = 0x4, offset = 0x4, fixed_abs, tag = 'smem constant byte address 0x4 - core index']
  #allocation1 [shape = 'u32[144,128]{1,0:T(1,128)}', space=vmem, size = 0x12000, scoped, tag = 'internal scratch']
  %s0 = inlined_call_operand.hbm [shape: f32[16,32], index: 0, kind: input, shape index: {}]
  %s1 = inlined_call_operand.hbm [shape: f32[16,16], index: 1, kind: input, shape index: {}]
  %s2 = inlined_call_operand.hbm [shape: f32[32,32], index: 2, kind: input, shape index: {}]
  %s3 = inlined_call_operand.hbm [shape: f32[16,32], index: 3, kind: input, shape index: {}]
  %s4 = inlined_call_operand.vmem [shape: f32[1,32], index: 4, kind: input, shape index: {}]
  %s5 = inlined_call_operand.hbm [shape: f32[16,32], index: 5, kind: output, shape index: {}]
  %s6 = sld [smem:[#allocation0]]
  $region69: #{tpu_custom_call.1} parent=0
    _
  %s8 = ssub.s32 1, %s6
  %s9 = scalar_select 0, %s8, %s6
  $region1: #{tpu_custom_call.1} parent=0
    #allocation2 [shape = 'u8[8192]{0}', space=vmem, size = 0x2000, scoped, tag = 'input window, operand 0']
    #allocation3 [shape = 's32[2]{0}', space=sflag, size = 0x8, scoped, tag = 'scoped memory for tpu_custom_call.1']
    #allocation4 [shape = 's32[2]{0}', space=sflag, size = 0x8, scoped, tag = 'scoped memory for tpu_custom_call.1']
    #allocation5 [shape = 'u8[8192]{0}', space=vmem, size = 0x2000, scoped, tag = 'input window, operand 1']
    #allocation6 [shape = 's32[2]{0}', space=sflag, size = 0x8, scoped, tag = 'scoped memory for tpu_custom_call.1']
    #allocation7 [shape = 'u8[16384]{0}', space=vmem, size = 0x4000, scoped, tag = 'input window, operand 2, single buffered']
    #allocation8 [shape = 'u8[8192]{0}', space=vmem, size = 0x2000, scoped, tag = 'input window, operand 3, single buffered']
    #allocation9 [shape = 's32[1]{0}', space=sflag, size = 0x4, scoped, tag = 'scoped memory for tpu_custom_call.1']
    #allocation10 [shape = 'u8[8192]{0}', space=vmem, size = 0x2000, scoped, tag = 'output window, operand 0']
    %10 = vsyncpa [#allocation3], 0
    %s11 = scalar_lea.sflag [#allocation3], 1
    %12 = vsyncpa %s11, 0
    %13 = vsyncpa [#allocation6], 0
    %s14 = scalar_lea.sflag [#allocation6], 1
    %15 = vsyncpa %s14, 0
    %16 = vsyncpa [#allocation9], 0
    %17 = vsyncpa [#allocation4], 0
    %s18 = scalar_lea.sflag [#allocation4], 1
    %19 = vsyncpa %s18, 0
    loop: start=0, step=1, limit=4
    $region2: #{tpu_custom_call.1} parent=1 // loop_pre_header
      _
    $region3: #{tpu_custom_call.1} parent=1 // loop_header
      %s21 = sphi 0, %s25
      %p22 = scmp.ge.s32.totalorder %s21, 4
      %s31 = sphi 0, %s33
      %s34 = sphi 0, %s31
      %s35 = sphi 0, %s34
      %s51 = sphi 0, %s35
      %s57 = sphi 0, %s59
      %s60 = sphi 0, %s57
      %s61 = sphi 0, %s60
      %s77 = sphi 0, %s61
      %s81 = sphi 0, %s81
      %s83 = sphi 0, %s81
      %s84 = sphi 0, %s83
      %s98 = sphi 0, %s84
      %s102 = sphi 0, %s102
      %s104 = sphi 0, %s102
      %s105 = sphi 0, %s104
      %s119 = sphi 0, %s105
      %s123 = sphi 0, %s123
      %s125 = sphi 0, %s123
      %s126 = sphi 0, %s125
      %s140 = sphi 0, %s126
      %s146 = sphi 0, %s148
      %s149 = sphi 0, %s146
      %s150 = sphi 0, %s149
      %s166 = sphi 0, %s150
    $region4: #{tpu_custom_call.1} parent=1 // loop_header_branch
      %24 = sbr.rel (%p22) target = $region8
    $region5: #{tpu_custom_call.1} parent=1 // loop_body
      %s26 = ssub.s32 %s21, 1
      %s27 = ssub.s32 %s21, 2
      %s28 = sadd.s32 %s21, 1
      %s29 = ssub.s32 %s21, %s28
      %p30 = scmp.eq.s32.totalorder %s29, 0
      %s32 = sadd.s32 %s31, 1
      %s33 = scalar_select %p30, %s31, %s32
      %p36 = pneg %p30
      %p37 = scmp.eq.s32.totalorder %s21, 1
      %p38 = por %p36, %p37
      %p39 = scmp.ne.s32.totalorder %s31, %s34
      %p40 = scmp.eq.s32.totalorder %s21, 0
      %p41 = por %p39, %p40
      %p42 = scmp.ne.s32.totalorder %s31, %s34
      %p43 = scmp.eq.s32.totalorder %s26, 1
      %p44 = por %p42, %p43
      %p45 = scmp.ne.s32.totalorder %s34, %s35
      %p46 = scmp.eq.s32.totalorder %s26, 0
      %p47 = por %p45, %p46
      %p48 = scmp.ne.s32.totalorder %s34, %s35
      %p49 = scmp.eq.s32.totalorder %s27, 1
      %p50 = por %p48, %p49
      %p52 = scmp.ne.s32.totalorder %s35, %s51
      %p53 = scmp.eq.s32.totalorder %s27, 0
      %p54 = por %p52, %p53
      %s55 = ssub.s32 %s21, %s28
      %p56 = scmp.eq.s32.totalorder %s55, 0
      %s58 = sadd.s32 %s57, 1
      %s59 = scalar_select %p56, %s57, %s58
      %p62 = pneg %p56
      %p63 = scmp.eq.s32.totalorder %s21, 1
      %p64 = por %p62, %p63
      %p65 = scmp.ne.s32.totalorder %s57, %s60
      %p66 = scmp.eq.s32.totalorder %s21, 0
      %p67 = por %p65, %p66
      %p68 = scmp.ne.s32.totalorder %s57, %s60
      %p69 = scmp.eq.s32.totalorder %s26, 1
      %p70 = por %p68, %p69
      %p71 = scmp.ne.s32.totalorder %s60, %s61
      %p72 = scmp.eq.s32.totalorder %s26, 0
      %p73 = por %p71, %p72
      %p74 = scmp.ne.s32.totalorder %s60, %s61
      %p75 = scmp.eq.s32.totalorder %s27, 1
      %p76 = por %p74, %p75
      %p78 = scmp.ne.s32.totalorder %s61, %s77
      %p79 = scmp.eq.s32.totalorder %s27, 0
      %p80 = por %p78, %p79
      %s82 = sadd.s32 %s81, 1
      %p85 = scmp.eq.s32.totalorder %s21, 1
      %p86 = scmp.ne.s32.totalorder %s81, %s83
      %p87 = scmp.eq.s32.totalorder %s21, 0
      %p88 = por %p86, %p87
      %p89 = scmp.ne.s32.totalorder %s81, %s83
      %p90 = scmp.eq.s32.totalorder %s26, 1
      %p91 = por %p89, %p90
      %p92 = scmp.ne.s32.totalorder %s83, %s84
      %p93 = scmp.eq.s32.totalorder %s26, 0
      %p94 = por %p92, %p93
      %p95 = scmp.ne.s32.totalorder %s83, %s84
      %p96 = scmp.eq.s32.totalorder %s27, 1
      %p97 = por %p95, %p96
      %p99 = scmp.ne.s32.totalorder %s84, %s98
      %p100 = scmp.eq.s32.totalorder %s27, 0
      %p101 = por %p99, %p100
      %s103 = sadd.s32 %s102, 1
      %p106 = scmp.eq.s32.totalorder %s21, 1
      %p107 = scmp.ne.s32.totalorder %s102, %s104
      %p108 = scmp.eq.s32.totalorder %s21, 0
      %p109 = por %p107, %p108
      %p110 = scmp.ne.s32.totalorder %s102, %s104
      %p111 = scmp.eq.s32.totalorder %s26, 1
      %p112 = por %p110, %p111
      %p113 = scmp.ne.s32.totalorder %s104, %s105
      %p114 = scmp.eq.s32.totalorder %s26, 0
      %p115 = por %p113, %p114
      %p116 = scmp.ne.s32.totalorder %s104, %s105
      %p117 = scmp.eq.s32.totalorder %s27, 1
      %p118 = por %p116, %p117
      %p120 = scmp.ne.s32.totalorder %s105, %s119
      %p121 = scmp.eq.s32.totalorder %s27, 0
      %p122 = por %p120, %p121
      %s124 = sadd.s32 %s123, 1
      %p127 = scmp.eq.s32.totalorder %s21, 1
      %p128 = scmp.ne.s32.totalorder %s123, %s125
      %p129 = scmp.eq.s32.totalorder %s21, 0
      %p130 = por %p128, %p129
      %p131 = scmp.ne.s32.totalorder %s123, %s125
      %p132 = scmp.eq.s32.totalorder %s26, 1
      %p133 = por %p131, %p132
      %p134 = scmp.ne.s32.totalorder %s125, %s126
      %p135 = scmp.eq.s32.totalorder %s26, 0
      %p136 = por %p134, %p135
      %p137 = scmp.ne.s32.totalorder %s125, %s126
      %p138 = scmp.eq.s32.totalorder %s27, 1
      %p139 = por %p137, %p138
      %p141 = scmp.ne.s32.totalorder %s126, %s140
      %p142 = scmp.eq.s32.totalorder %s27, 0
      %p143 = por %p141, %p142
      %s144 = ssub.s32 %s21, %s28
      %p145 = scmp.eq.s32.totalorder %s144, 0
      %s147 = sadd.s32 %s146, 1
      %s148 = scalar_select %p145, %s146, %s147
      %p151 = pneg %p145
      %p152 = scmp.eq.s32.totalorder %s21, 1
      %p153 = por %p151, %p152
      %p154 = scmp.ne.s32.totalorder %s146, %s149
      %p155 = scmp.eq.s32.totalorder %s21, 0
      %p156 = por %p154, %p155
      %p157 = scmp.ne.s32.totalorder %s146, %s149
      %p158 = scmp.eq.s32.totalorder %s26, 1
      %p159 = por %p157, %p158
      %p160 = scmp.ne.s32.totalorder %s149, %s150
      %p161 = scmp.eq.s32.totalorder %s26, 0
      %p162 = por %p160, %p161
      %p163 = scmp.ne.s32.totalorder %s149, %s150
      %p164 = scmp.eq.s32.totalorder %s27, 1
      %p165 = por %p163, %p164
      %p167 = scmp.ne.s32.totalorder %s150, %s166
      %p168 = scmp.eq.s32.totalorder %s27, 0
      %p169 = por %p167, %p168
      %p170 = scmp.le.s32.totalorder 1, %s21
      %p171 = scmp.lt.s32.totalorder %s21, 3
      %p172 = pnand %p170, %p171
      %p173 = pneg %p172
      // Predicated region
      $region9: #{tpu_custom_call.1} parent=5 // pred_check
        _
      $region10: #{tpu_custom_call.1} parent=5 // pred_check_branch
        %175 = sbr.rel (%p172) target = $region12
      $region11: #{tpu_custom_call.1} parent=5 // pred_region
        %s176 = ssub.s32 %s21, 1
        // Predicated region
        $region13: #{tpu_custom_call.1} parent=11 // pred_check
          %p177 = pneg %p94
        $region14: #{tpu_custom_call.1} parent=11 // pred_check_branch
          %179 = sbr.rel (%p177) target = $region16
        $region15: #{tpu_custom_call.1} parent=11 // pred_region
          %s181 = ssub.s32 512, 512
          %182 = vsyncadd [#allocation6], %s181
          %s183 = sshll.u32 [#allocation7], 4
          %s184 = int_to_ptr.vmem [resolvable:$true] %s183
          %189 = dma.hbm_to_vmem [thread:$0]  %s2, 512, %s184, [#allocation6], 128, 128, 8
        $region16: #{tpu_custom_call.1} parent=11 // pred_fallthru
          _
        // Predicated region
        $region17: #{tpu_custom_call.1} parent=11 // pred_check
          %p190 = pneg %p115
        $region18: #{tpu_custom_call.1} parent=11 // pred_check_branch
          %192 = sbr.rel (%p190) target = $region20
        $region19: #{tpu_custom_call.1} parent=11 // pred_region
          %s194 = ssub.s32 256, 256
          %195 = vsyncadd [#allocation9], %s194
          %s196 = sshll.u32 [#allocation8], 4
          %s197 = int_to_ptr.vmem [resolvable:$true] %s196
          %202 = dma.hbm_to_vmem [thread:$0]  %s3, 256, %s197, [#allocation9], 128, 128, 8
        $region20: #{tpu_custom_call.1} parent=11 // pred_fallthru
          _
        // Predicated region
        $region21: #{tpu_custom_call.1} parent=11 // pred_check
          %p203 = pneg %p136
        $region22: #{tpu_custom_call.1} parent=11 // pred_check_branch
          %205 = sbr.rel (%p203) target = $region24
        $region23: #{tpu_custom_call.1} parent=11 // pred_region
          _
        $region24: #{tpu_custom_call.1} parent=11 // pred_fallthru
          _
      $region12: #{tpu_custom_call.1} parent=5 // pred_fallthru
        _
      %p206 = scmp.lt.s32.totalorder %s21, 2
      // Predicated region
      $region25: #{tpu_custom_call.1} parent=5 // pred_check
        %p207 = pneg %p206
      $region26: #{tpu_custom_call.1} parent=5 // pred_check_branch
        %209 = sbr.rel (%p207) target = $region28
      $region27: #{tpu_custom_call.1} parent=5 // pred_region
        // Predicated region
        $region29: #{tpu_custom_call.1} parent=27 // pred_check
          %p210 = pneg %p41
        $region30: #{tpu_custom_call.1} parent=27 // pred_check_branch
          %212 = sbr.rel (%p210) target = $region32
        $region31: #{tpu_custom_call.1} parent=27 // pred_region
          %s213 = sand.u32 %s31, 1
          %s214 = scalar_lea.sflag [#allocation3], %s213
          %s215 = sand.u32 %s31, 1
          %s216 = smul.addr %s215, 8
          %s217 = scalar_lea.vmem [#allocation2], %s216
          %s219 = ssub.s32 128, 128
          %220 = vsyncadd %s214, %s219
          %s221 = smul.addr %s21, 128
          %s222 = scalar_lea.hbm %s0, %s221
          %s224 = sshll.u32 %s217, 4
          %s225 = int_to_ptr.vmem [resolvable:$true] %s224
          %227 = dma.hbm_to_vmem [thread:$0]  %s222, 128, %s225, %s214
        $region32: #{tpu_custom_call.1} parent=27 // pred_fallthru
          _
        // Predicated region
        $region33: #{tpu_custom_call.1} parent=27 // pred_check
          %p228 = pneg %p67
        $region34: #{tpu_custom_call.1} parent=27 // pred_check_branch
          %230 = sbr.rel (%p228) target = $region36
        $region35: #{tpu_custom_call.1} parent=27 // pred_region
          %s231 = sand.u32 %s21, 1
          %s232 = scalar_lea.sflag [#allocation6], %s231
          %s233 = sand.u32 %s57, 1
          %s234 = smul.addr %s233, 8
          %s235 = scalar_lea.vmem [#allocation5], %s234
          %s237 = ssub.s32 128, 128
          %238 = vsyncadd %s232, %s237
          %s239 = smul.addr %s21, 128
          %s240 = scalar_lea.hbm %s1, %s239
          %s242 = sshll.u32 %s235, 4
          %s243 = int_to_ptr.vmem [resolvable:$true] %s242
          %245 = dma.hbm_to_vmem [thread:$0]  %s240, 128, %s243, %s232
        $region36: #{tpu_custom_call.1} parent=27 // pred_fallthru
          _
      $region28: #{tpu_custom_call.1} parent=5 // pred_fallthru
        _
      %p246 = scmp.le.s32.totalorder 1, %s21
      %p247 = scmp.lt.s32.totalorder %s21, 3
      %p248 = pnand %p246, %p247
      %p249 = pneg %p248
      // Predicated region
      $region37: #{tpu_custom_call.1} parent=5 // pred_check
        _
      $region38: #{tpu_custom_call.1} parent=5 // pred_check_branch
        %251 = sbr.rel (%p248) target = $region40
      $region39: #{tpu_custom_call.1} parent=5 // pred_region
        %s252 = ssub.s32 %s21, 1
        %s253 = sand.u32 %s34, 1
        %s254 = scalar_lea.sflag [#allocation3], %s253
        %s255 = sand.u32 %s34, 1
        %s256 = smul.addr %s255, 8
        %s257 = scalar_lea.vmem [#allocation2], %s256
        // Predicated region
        $region41: #{tpu_custom_call.1} parent=39 // pred_check
          %p258 = pneg %p47
        $region42: #{tpu_custom_call.1} parent=39 // pred_check_branch
          %260 = sbr.rel (%p258) target = $region44
        $region43: #{tpu_custom_call.1} parent=39 // pred_region
          %261 = dma.done %s254, 128
        $region44: #{tpu_custom_call.1} parent=39 // pred_fallthru
          _
        %s262 = sand.u32 %s26, 1
        %s263 = scalar_lea.sflag [#allocation6], %s262
        %s264 = sand.u32 %s60, 1
        %s265 = smul.addr %s264, 8
        %s266 = scalar_lea.vmem [#allocation5], %s265
        // Predicated region
        $region45: #{tpu_custom_call.1} parent=39 // pred_check
          %p267 = pneg %p73
        $region46: #{tpu_custom_call.1} parent=39 // pred_check_branch
          %269 = sbr.rel (%p267) target = $region48
        $region47: #{tpu_custom_call.1} parent=39 // pred_region
          %270 = dma.done %s263, 128
        $region48: #{tpu_custom_call.1} parent=39 // pred_fallthru
          _
        // Predicated region
        $region49: #{tpu_custom_call.1} parent=39 // pred_check
          %p271 = pneg %p94
        $region50: #{tpu_custom_call.1} parent=39 // pred_check_branch
          %273 = sbr.rel (%p271) target = $region52
        $region51: #{tpu_custom_call.1} parent=39 // pred_region
          %274 = dma.done [#allocation6], 512
        $region52: #{tpu_custom_call.1} parent=39 // pred_fallthru
          _
        // Predicated region
        $region53: #{tpu_custom_call.1} parent=39 // pred_check
          %p275 = pneg %p115
        $region54: #{tpu_custom_call.1} parent=39 // pred_check_branch
          %277 = sbr.rel (%p275) target = $region56
        $region55: #{tpu_custom_call.1} parent=39 // pred_region
          %278 = dma.done [#allocation9], 256
        $region56: #{tpu_custom_call.1} parent=39 // pred_fallthru
          _
        %s279 = sand.u32 %s34, 1
        %s280 = scalar_lea.sflag [#allocation3], %s279
        %s281 = sand.u32 %s34, 1
        %s282 = smul.addr %s281, 8
        %s283 = scalar_lea.vmem [#allocation2], %s282
        %p284 = pneg %p47
        %p285 = pneg %p44
        %s286 = sand.u32 %s26, 1
        %s287 = scalar_lea.sflag [#allocation6], %s286
        %s288 = sand.u32 %s60, 1
        %s289 = smul.addr %s288, 8
        %s290 = scalar_lea.vmem [#allocation5], %s289
        %p291 = pneg %p73
        %p292 = pneg %p70
        %p293 = pneg %p94
        %p294 = pneg %p91
        %p295 = pneg %p115
        %p296 = pneg %p112
        %p297 = pneg %p136
        %p298 = pneg %p133
        %p299 = pneg %p162
        %p300 = pneg %p159
        %s301 = sand.u32 %s149, 1
        %s302 = scalar_lea.sflag [#allocation4], %s301
        %s303 = sand.u32 %s149, 1
        %s304 = smul.addr %s303, 8
        %s305 = scalar_lea.vmem [#allocation10], %s304
        %v306 = vld [vmem:[%s257] sm:$0xff]
        %vm307 = vcmask 261120
        %v308 = vsel %vm307, %v306, 0.0
        %309 = vadd.xlane.f32.xlu0 %v308
        %v310 = vpop.xlane.xlu0 %309
        %v311 = vrcp.pop 32.0
        %v312 = vmul.f32 %v310, %v311
        %v313 = vsub.f32 %v306, %v312
        %v314 = vmul.f32 %v313, %v313
        %v315 = vsel %vm307, %v314, 0.0
        %316 = vadd.xlane.f32.xlu0 %v315
        %v317 = vpop.xlane.xlu0 %316
        %v318 = vmul.f32 %v317, %v311
        %v319 = vadd.f32 %v318, 1e-05
        %v320 = vrsqrt.pop %v319
        %v321 = vmul.f32 %v313, %v320
        %v322 = vld [vmem:[%s266] sm:$0xff]
        %vm323 = vcmask 130048
        %v324 = vsel %vm323, %v322, 0.0
        %325 = vadd.xlane.f32.xlu0 %v324
        %v326 = vpop.xlane.xlu0 %325
        %v327 = vrcp.pop 16.0
        %v328 = vmul.f32 %v326, %v327
        %v329 = vsub.f32 %v322, %v328
        %v330 = vmul.f32 %v329, %v329
        %v331 = vsel %vm323, %v330, 0.0
        %332 = vadd.xlane.f32.xlu0 %v331
        %v333 = vpop.xlane.xlu0 %332
        %v334 = vmul.f32 %v333, %v327
        %v335 = vadd.f32 %v334, 1e-05
        %v336 = vrsqrt.pop %v335
        %v337 = vmul.f32 %v329, %v336
        %v338 = vld [vmem:[#allocation7] sm:$0xff]
        %v339 = vld [vmem:[#allocation7 + $0x8] sm:$0xff]
        %v340 = vld [vmem:[#allocation7 + $0x10] sm:$0xff]
        %v341 = vld [vmem:[#allocation7 + $0x18] sm:$0xff]
        %v342 = vld [vmem:[#allocation8] sm:$0xff]
        %v343 = vld [vmem:[#allocation8 + $0x8] sm:$0xff]
        %v345 = vsel %vm323, %v337, 0
        %347 = vmatprep.subr.mxu0 0.0
        %348 = vmatpush1.msra.mxu0 %v342
        %349 = vmatprep.subr.mxu0 0.0
        %350 = vmatpush1.msra.mxu0 %v343
        %351 = vmatprep.subr.mxu0 0.0
        %352 = vmatpush1.msra.mxu0 0.0
        %353 = vmatprep.subr.mxu0 0.0
        %354 = vmatpush1.msra.mxu0 0.0
        %355 = vmatprep.subr.mxu0 0.0
        %356 = vmatpush1.msra.mxu0 0.0
        %357 = vmatprep.subr.mxu0 0.0
        %358 = vmatpush1.msra.mxu0 0.0
        %359 = vmatprep.subr.mxu0 0.0
        %360 = vmatpush1.msra.mxu0 0.0
        %361 = vmatprep.subr.mxu0 0.0
        %362 = vmatpush1.msra.mxu0 0.0
        %363 = vmatprep.subr.mxu0 0.0
        %364 = vmatpush1.msra.mxu0 0.0
        %365 = vmatprep.subr.mxu0 0.0
        %366 = vmatpush1.msra.mxu0 0.0
        %367 = vmatprep.subr.mxu0 0.0
        %368 = vmatpush1.msra.mxu0 0.0
        %369 = vmatprep.subr.mxu0 0.0
        %370 = vmatpush1.msra.mxu0 0.0
        %371 = vmatprep.subr.mxu0 0.0
        %372 = vmatpush1.msra.mxu0 0.0
        %373 = vmatprep.subr.mxu0 0.0
        %374 = vmatpush1.msra.mxu0 0.0
        %375 = vmatprep.subr.mxu0 0.0
        %376 = vmatpush1.msra.mxu0 0.0
        %377 = vmatprep.subr.mxu0 0.0
        %378 = vmatpush1.msra.mxu0 0.0
        %379 = vmatprep.subr.mxu0 0.0
        %380 = vmatpush1.msra.mxu0 0.0
        %381 = vmatprep.subr.mxu0 0.0
        %382 = vmatpush1.msra.mxu0 0.0
        %383 = vmatprep.subr.mxu0 0.0
        %384 = vmatpush1.msra.mxu0 0.0
        %385 = vmatprep.subr.mxu0 0.0
        %386 = vmatpush1.msra.mxu0 0.0
        %387 = vmatprep.subr.mxu0 0.0
        %388 = vmatpush1.msra.mxu0 0.0
        %389 = vmatprep.subr.mxu0 0.0
        %390 = vmatpush1.msra.mxu0 0.0
        %391 = vmatprep.subr.mxu0 0.0
        %392 = vmatpush1.msra.mxu0 0.0
        %393 = vmatprep.subr.mxu0 0.0
        %394 = vmatpush1.msra.mxu0 0.0
        %395 = vmatprep.subr.mxu0 0.0
        %396 = vmatpush1.msra.mxu0 0.0
        %397 = vmatprep.subr.mxu0 0.0
        %398 = vmatpush1.msra.mxu0 0.0
        %399 = vmatprep.subr.mxu0 0.0
        %400 = vmatpush1.msra.mxu0 0.0
        %401 = vmatprep.subr.mxu0 0.0
        %402 = vmatpush1.msra.mxu0 0.0
        %403 = vmatprep.subr.mxu0 0.0
        %404 = vmatpush1.msra.mxu0 0.0
        %405 = vmatprep.subr.mxu0 0.0
        %406 = vmatpush1.msra.mxu0 0.0
        %407 = vmatprep.subr.mxu0 0.0
        %408 = vmatpush1.msra.mxu0 0.0
        %409 = vmatprep.subr.mxu0 0.0
        %410 = vmatpush1.msra.mxu0 0.0
        %411 = vmatprep.mubr.f32.mxu0 0.0
        %412 = vmatmul.mubr.f32.gmra.mrb[0].mxu0 %v345
        %v413 = vpop.f32.mrb[0].mxu0
        %v414 = vadd.f32 0.0, %v413
        %v415 = vpop.f32.mrb[0].mxu0
        %416 = vdwg.mxu0
        %v418 = vsel %vm307, %v321, 0
        %420 = vmatprep.subr.mxu0 0.0
        %421 = vmatpush1.msra.mxu0 %v338
        %422 = vmatprep.subr.mxu0 0.0
        %423 = vmatpush1.msra.mxu0 %v339
        %424 = vmatprep.subr.mxu0 0.0
        %425 = vmatpush1.msra.mxu0 %v340
        %426 = vmatprep.subr.mxu0 0.0
        %427 = vmatpush1.msra.mxu0 %v341
        %428 = vmatprep.subr.mxu0 0.0
        %429 = vmatpush1.msra.mxu0 0.0
        %430 = vmatprep.subr.mxu0 0.0
        %431 = vmatpush1.msra.mxu0 0.0
        %432 = vmatprep.subr.mxu0 0.0
        %433 = vmatpush1.msra.mxu0 0.0
        %434 = vmatprep.subr.mxu0 0.0
        %435 = vmatpush1.msra.mxu0 0.0
        %436 = vmatprep.subr.mxu0 0.0
        %437 = vmatpush1.msra.mxu0 0.0
        %438 = vmatprep.subr.mxu0 0.0
        %439 = vmatpush1.msra.mxu0 0.0
        %440 = vmatprep.subr.mxu0 0.0
        %441 = vmatpush1.msra.mxu0 0.0
        %442 = vmatprep.subr.mxu0 0.0
        %443 = vmatpush1.msra.mxu0 0.0
        %444 = vmatprep.subr.mxu0 0.0
        %445 = vmatpush1.msra.mxu0 0.0
        %446 = vmatprep.subr.mxu0 0.0
        %447 = vmatpush1.msra.mxu0 0.0
        %448 = vmatprep.subr.mxu0 0.0
        %449 = vmatpush1.msra.mxu0 0.0
        %450 = vmatprep.subr.mxu0 0.0
        %451 = vmatpush1.msra.mxu0 0.0
        %452 = vmatprep.subr.mxu0 0.0
        %453 = vmatpush1.msra.mxu0 0.0
        %454 = vmatprep.subr.mxu0 0.0
        %455 = vmatpush1.msra.mxu0 0.0
        %456 = vmatprep.subr.mxu0 0.0
        %457 = vmatpush1.msra.mxu0 0.0
        %458 = vmatprep.subr.mxu0 0.0
        %459 = vmatpush1.msra.mxu0 0.0
        %460 = vmatprep.subr.mxu0 0.0
        %461 = vmatpush1.msra.mxu0 0.0
        %462 = vmatprep.subr.mxu0 0.0
        %463 = vmatpush1.msra.mxu0 0.0
        %464 = vmatprep.subr.mxu0 0.0
        %465 = vmatpush1.msra.mxu0 0.0
        %466 = vmatprep.subr.mxu0 0.0
        %467 = vmatpush1.msra.mxu0 0.0
        %468 = vmatprep.subr.mxu0 0.0
        %469 = vmatpush1.msra.mxu0 0.0
        %470 = vmatprep.subr.mxu0 0.0
        %471 = vmatpush1.msra.mxu0 0.0
        %472 = vmatprep.subr.mxu0 0.0
        %473 = vmatpush1.msra.mxu0 0.0
        %474 = vmatprep.subr.mxu0 0.0
        %475 = vmatpush1.msra.mxu0 0.0
        %476 = vmatprep.subr.mxu0 0.0
        %477 = vmatpush1.msra.mxu0 0.0
        %478 = vmatprep.subr.mxu0 0.0
        %479 = vmatpush1.msra.mxu0 0.0
        %480 = vmatprep.subr.mxu0 0.0
        %481 = vmatpush1.msra.mxu0 0.0
        %482 = vmatprep.subr.mxu0 0.0
        %483 = vmatpush1.msra.mxu0 0.0
        %484 = vmatprep.mubr.f32.mxu0 0.0
        %485 = vmatmul.mubr.f32.gmra.mrb[0].mxu0 %v418
        %v486 = vpop.f32.mrb[0].mxu0
        %v487 = vadd.f32 %v414, %v486
        %v488 = vpop.f32.mrb[0].mxu0
        %489 = vdwg.mxu0
        %v490 = vld [vmem:[%s4] sm:$0x1]
        %v492 = vlaneseq
        %v493 = vshrl.u32 %v492, 7
        %v494 = vsub.s32 0, %v493
        %v495 = vrot.slane %v490, %v494
        %v497 = vadd.f32 %v487, %v495
        %498 = vst.msk [vmem:[%s305] sm:$0xff] %vm307, %v497
        %s499 = sand.u32 %s149, 1
        %s500 = scalar_lea.sflag [#allocation4], %s499
        %s501 = sand.u32 %s149, 1
        %s502 = smul.addr %s501, 8
        %s503 = scalar_lea.vmem [#allocation10], %s502
        // Predicated region
        $region57: #{tpu_custom_call.1} parent=39 // pred_check
          %p504 = pneg %p159
        $region58: #{tpu_custom_call.1} parent=39 // pred_check_branch
          %506 = sbr.rel (%p504) target = $region60
        $region59: #{tpu_custom_call.1} parent=39 // pred_region
          %s508 = ssub.s32 128, 128
          %509 = vsyncadd %s500, %s508
          %s510 = smul.addr %s26, 128
          %s511 = scalar_lea.hbm %s5, %s510
          %s513 = sshll.u32 %s503, 4
          %s514 = int_to_ptr.vmem [resolvable:$true] %s513
          %516 = dma.vmem_to_hbm [thread:$0]  %s514, 128, %s511, %s500
        $region60: #{tpu_custom_call.1} parent=39 // pred_fallthru
          _
      $region40: #{tpu_custom_call.1} parent=5 // pred_fallthru
        _
      %p517 = scmp.le.s32.totalorder 2, %s21
      // Predicated region
      $region61: #{tpu_custom_call.1} parent=5 // pred_check
        %p518 = pneg %p517
      $region62: #{tpu_custom_call.1} parent=5 // pred_check_branch
        %520 = sbr.rel (%p518) target = $region64
      $region63: #{tpu_custom_call.1} parent=5 // pred_region
        %s521 = ssub.s32 %s21, 2
        // Predicated region
        $region65: #{tpu_custom_call.1} parent=63 // pred_check
          %p522 = pneg %p165
        $region66: #{tpu_custom_call.1} parent=63 // pred_check_branch
          %524 = sbr.rel (%p522) target = $region68
        $region67: #{tpu_custom_call.1} parent=63 // pred_region
          %s525 = sand.u32 %s150, 1
          %s526 = scalar_lea.sflag [#allocation4], %s525
          %s527 = sand.u32 %s150, 1
          %s528 = smul.addr %s527, 8
          %s529 = scalar_lea.vmem [#allocation10], %s528
          %530 = dma.done %s526, 128
        $region68: #{tpu_custom_call.1} parent=63 // pred_fallthru
          _
      $region64: #{tpu_custom_call.1} parent=5 // pred_fallthru
        _
    $region6: #{tpu_custom_call.1} parent=1 // loop_footer
      %s25 = sadd.s32 1, %s21
    $region7: #{tpu_custom_call.1} parent=1 // loop_footer_branch
      %20 = sbr.rel target = $region3
    $region8: #{tpu_custom_call.1} parent=1 // loop_exit
      _
    %531 = vsyncpa [#allocation3], 1
    %s532 = scalar_lea.sflag [#allocation3], 1
    %533 = vsyncpa %s532, 1
    %534 = vsyncpa [#allocation6], 1
    %s535 = scalar_lea.sflag [#allocation6], 1
    %536 = vsyncpa %s535, 1
    %537 = vsyncpa [#allocation9], 1
    %538 = vsyncpa [#allocation4], 1
    %s539 = scalar_lea.sflag [#allocation4], 1
    %540 = vsyncpa %s539, 1

</llo_original>
